<compile_context>
chip_gen: v7x
topology: tpu7x:2x2x1
jax: 0.10.0
libtpu: 0.0.40
codegen_flags: <defaults>
</compile_context>

<pallas_src>
import functools

import jax
import jax.numpy as jnp
from jax.experimental import pallas as pl
from jax.experimental.pallas import tpu as pltpu

LANE = 128
_VMEM_BUDGET = 12 * 1024 * 1024   # stay under v5e's 16 MiB default scoped VMEM


def _timeblock_kernel(x_ref, w13_ref, w2_ref, b13_ref, b2_ref, out_ref):
    """x: (tr, T*C_in); w13/w2: (T*C_in, W_pad); b*: (1, W_pad); out: (tr, W_pad)."""
    x = x_ref[...]
    # conv2 path -> sigmoid gate.  sigmoid(z) = 0.5*tanh(0.5*z) + 0.5 (one EUP op).
    y2 = jnp.dot(x, w2_ref[...], preferred_element_type=jnp.float32) + b2_ref[...]
    gate = 0.5 * jnp.tanh(0.5 * y2) + 0.5
    # fused conv1+conv3 path (weights and biases pre-summed in the wrapper).
    y13 = jnp.dot(x, w13_ref[...], preferred_element_type=jnp.float32) + b13_ref[...]
    out_ref[...] = jnp.maximum(y13 + gate, 0.0).astype(out_ref.dtype)


def _flatten_weight(W):
    """W: (C_out, C_in, 1, K) -> (K*C_in, C_out) with row index k*C_in + c."""
    C_out, C_in, _, K = W.shape
    return jnp.transpose(W[:, :, 0, :], (2, 1, 0)).reshape(K * C_in, C_out)


def _band_weight(Wf, T, T_out, C_in, K, W_pad):
    """Wf: (K*C_in, C_out) -> block-banded (T*C_in, W_pad), f32, densely packed.

    Column t*C_out + co reproduces output time t / channel co of the VALID
    (1, K) temporal conv when multiplied with a row x[t'*C_in + c] = X[..., t', c].
    Columns >= T_out*C_out are zero lane padding.
    """
    C_out = Wf.shape[1]
    Wf32 = Wf.astype(jnp.float32)
    Wb = jnp.zeros((T * C_in, W_pad), jnp.float32)
    for t in range(T_out):
        Wb = Wb.at[t * C_in:t * C_in + K * C_in,
                   t * C_out:t * C_out + C_out].set(Wf32)
    return Wb


@functools.partial(
    jax.jit,
    static_argnames=("kernel_size", "tile_r", "compute_dtype", "out_dtype"))
def timeblock_forward(X, W1, b1, W2, b2, W3, b3, *, kernel_size=3, tile_r=512,
                      compute_dtype=jnp.float32, out_dtype=None):
    B, N, T, C_in = X.shape
    C_out = W1.shape[0]
    K = kernel_size
    T_out = T - K + 1
    if out_dtype is None:
        out_dtype = X.dtype

    W = T_out * C_out                        # logical (densely packed) output width
    W_pad = pl.cdiv(W, LANE) * LANE          # lane-dense total width (mult of 128)

    # ---- weights: fuse conv1+conv3, band over time, dense channel packing.
    W13b = _band_weight(_flatten_weight(W1) + _flatten_weight(W3),
                        T, T_out, C_in, K, W_pad).astype(compute_dtype)
    W2b = _band_weight(_flatten_weight(W2),
                       T, T_out, C_in, K, W_pad).astype(compute_dtype)

    def dense_bias(b):
        bb = jnp.tile(b.astype(jnp.float32), T_out)              # (T_out*C_out,)
        return jnp.zeros((1, W_pad), jnp.float32).at[0, :W].set(bb)

    b13 = dense_bias(b1 + b3)    # combined bias for the conv1+conv3 path
    b2r = dense_bias(b2)         # conv2 bias (inside sigmoid)

    # ---- input: one node-row per sublane row, full time window in lanes. Read 1x.
    R = B * N
    Xr = X.reshape(R, T * C_in).astype(compute_dtype)

    align = 16 if jnp.dtype(compute_dtype).itemsize == 2 else 8   # bf16 packs 2 rows/sublane
    if R <= align:
        tr = R                                                    # single full-extent block
    else:
        # >=2 grid steps so v7x's two TensorCores both get work; sublane aligned.
        cap2 = max(align, (R // (2 * align)) * align)
        tr = max(align, min(int(tile_r), cap2))
        tr = (tr // align) * align
        # Conservative per-step VMEM estimate; shrink tile to fit v5e's default limit.
        itm = jnp.dtype(compute_dtype).itemsize
        oitm = jnp.dtype(out_dtype).itemsize
        const_b = 2 * (2 * T * C_in * W_pad * itm + W_pad * 4)    # weights + biases (dbl-buf)

        def step_bytes(t):
            return (2 * (t * T * C_in * itm + t * W_pad * oitm)   # dbl-buffered x / out tiles
                    + 3 * t * W_pad * 4                           # f32 epilogue intermediates
                    + const_b)

        while tr > align and step_bytes(tr) > _VMEM_BUDGET:
            tr -= align

    grid = (pl.cdiv(R, tr),)    # ragged tail handled as a partial last block (no jnp.pad of X)

    out = pl.pallas_call(
        _timeblock_kernel,
        out_shape=jax.ShapeDtypeStruct((R, W_pad), out_dtype),
        grid_spec=pltpu.PrefetchScalarGridSpec(
            num_scalar_prefetch=0,
            grid=grid,
            in_specs=[
                pl.BlockSpec((tr, T * C_in), lambda i: (i, 0)),        # X rows
                pl.BlockSpec((T * C_in, W_pad), lambda i: (0, 0)),     # band(W1+W3)
                pl.BlockSpec((T * C_in, W_pad), lambda i: (0, 0)),     # band(W2)
                pl.BlockSpec((1, W_pad), lambda i: (0, 0)),            # b1+b3
                pl.BlockSpec((1, W_pad), lambda i: (0, 0)),            # b2
            ],
            out_specs=pl.BlockSpec((tr, W_pad), lambda i: (i, 0)),
        ),
        compiler_params=pltpu.CompilerParams(
            dimension_semantics=("parallel",)),
    )(Xr, W13b, W2b, b13, b2r)

    # W_pad == W (T_out*C_out already a multiple of 128) makes this slice a no-op.
    return out[:, :W].reshape(B, N, T_out, C_out)


def _reference_timeblock(X, W1, b1, W2, b2, W3, b3):
    """Pure-JAX reference mimicking the PyTorch forward (NCHW Conv2d)."""
    Xn = jnp.transpose(X, (0, 3, 1, 2))  # (B, C_in, N, T)

    def conv(Xn, Wc, b):
        y = jax.lax.conv_general_dilated(
            Xn, Wc, window_strides=(1, 1), padding="VALID",
            dimension_numbers=("NCHW", "OIHW", "NCHW"))
        return y + b[None, :, None, None]

    temp = conv(Xn, W1, b1) + jax.nn.sigmoid(conv(Xn, W2, b2))
    out = jax.nn.relu(temp + conv(Xn, W3, b3))
    return jnp.transpose(out, (0, 2, 3, 1))  # (B, N, T_out, C_out)


if __name__ == "__main__":
    # Small shapes consistent with the module.
    B, N, T, C_in, C_out, K = 2, 16, 8, 4, 32, 3

    key = jax.random.PRNGKey(0)
    kx, k1, k2, k3, kb1, kb2, kb3 = jax.random.split(key, 7)

    X = jax.random.normal(kx, (B, N, T, C_in), dtype=jnp.float32)

    # Deterministic synthetic Conv2d parameters: (C_out, C_in, 1, K) + (C_out,)
    scale = 1.0 / (C_in * K) ** 0.5
    W1 = jax.random.uniform(k1, (C_out, C_in, 1, K), jnp.float32, -scale, scale)
    W2 = jax.random.uniform(k2, (C_out, C_in, 1, K), jnp.float32, -scale, scale)
    W3 = jax.random.uniform(k3, (C_out, C_in, 1, K), jnp.float32, -scale, scale)
    b1 = jax.random.uniform(kb1, (C_out,), jnp.float32, -scale, scale)
    b2 = jax.random.uniform(kb2, (C_out,), jnp.float32, -scale, scale)
    b3 = jax.random.uniform(kb3, (C_out,), jnp.float32, -scale, scale)

    ref = _reference_timeblock(X, W1, b1, W2, b2, W3, b3)

    # f32 path (exact; multi-step grid thanks to the >=2-steps tile cap).
    out = timeblock_forward(X, W1, b1, W2, b2, W3, b3, kernel_size=K)
    out = jax.block_until_ready(out)
    assert out.shape == (B, N, T - K + 1, C_out), out.shape
    assert jnp.allclose(out, ref, atol=1e-4, rtol=1e-4), "f32 mismatch vs reference"

    # bf16 reads + bf16 output store (recommended on all generations for this
    # memory-bound kernel); accumulation and elementwise math stay f32.
    out_bf16 = jax.block_until_ready(
        timeblock_forward(X, W1, b1, W2, b2, W3, b3, kernel_size=K,
                          compute_dtype=jnp.bfloat16, out_dtype=jnp.bfloat16))
    assert out_bf16.shape == (B, N, T - K + 1, C_out), out_bf16.shape
    assert jnp.allclose(out_bf16.astype(jnp.float32), ref,
                        atol=1e-1, rtol=1e-1), "bf16 mismatch vs reference"

    print("KERNEL_OK")
</pallas_src>

<mosaic_0001>
module attributes {stable_mosaic.version = 11 : i64} {
  func.func @_timeblock_kernel(%arg0: i32, %arg1: memref<16x32xf32, #tpu.memory_space<vmem>>, %arg2: memref<32x256xf32, #tpu.memory_space<vmem>>, %arg3: memref<32x256xf32, #tpu.memory_space<vmem>>, %arg4: memref<1x256xf32, #tpu.memory_space<vmem>>, %arg5: memref<1x256xf32, #tpu.memory_space<vmem>>, %arg6: memref<16x256xf32, #tpu.memory_space<vmem>>) attributes {dimension_semantics = [#tpu.dimension_semantics<parallel>], iteration_bounds = array<i64: 2>, scalar_prefetch = 0 : i64, scratch_operands = 0 : i64, tpu.core_type = #tpu.core_type<tc>, window_params = [{transform_indices = @transform_0, window_bounds = array<i64: 16, 32>}, {pipeline_mode = #tpu.pipeline_mode<synchronous>, transform_indices = @transform_1, window_bounds = array<i64: 32, 256>}, {pipeline_mode = #tpu.pipeline_mode<synchronous>, transform_indices = @transform_2, window_bounds = array<i64: 32, 256>}, {pipeline_mode = #tpu.pipeline_mode<synchronous>, transform_indices = @transform_3, window_bounds = array<i64: 1, 256>}, {pipeline_mode = #tpu.pipeline_mode<synchronous>, transform_indices = @transform_4, window_bounds = array<i64: 1, 256>}, {transform_indices = @transform_5, window_bounds = array<i64: 16, 256>}]} {
    %c0 = arith.constant 0 : index
    %c0_0 = arith.constant 0 : index
    %0 = vector.load %arg1[%c0, %c0_0] : memref<16x32xf32, #tpu.memory_space<vmem>>, vector<16x32xf32>
    %c0_1 = arith.constant 0 : index
    %c0_2 = arith.constant 0 : index
    %1 = vector.load %arg3[%c0_1, %c0_2] : memref<32x256xf32, #tpu.memory_space<vmem>>, vector<32x256xf32>
    %cst = arith.constant dense<0.000000e+00> : vector<16x256xf32>
    %2 = tpu.matmul %0, %1, %cst {dimension_numbers = #tpu.dot_dimension_numbers<[1], [0], [0], [1], [0, 0, 1, 1], [], []>} : vector<16x32xf32>, vector<32x256xf32>, vector<16x256xf32> -> vector<16x256xf32>
    %c0_3 = arith.constant 0 : index
    %c0_4 = arith.constant 0 : index
    %3 = vector.load %arg5[%c0_3, %c0_4] : memref<1x256xf32, #tpu.memory_space<vmem>>, vector<1x256xf32>
    %4 = vector.broadcast %3 : vector<1x256xf32> to vector<16x256xf32>
    %5 = arith.addf %2, %4 : vector<16x256xf32>
    %cst_5 = arith.constant 5.000000e-01 : f32
    %6 = vector.broadcast %cst_5 : f32 to vector<16x256xf32>
    %7 = arith.mulf %6, %5 : vector<16x256xf32>
    %8 = math.tanh %7 : vector<16x256xf32>
    %cst_6 = arith.constant 5.000000e-01 : f32
    %9 = vector.broadcast %cst_6 : f32 to vector<16x256xf32>
    %10 = arith.mulf %9, %8 : vector<16x256xf32>
    %cst_7 = arith.constant 5.000000e-01 : f32
    %11 = vector.broadcast %cst_7 : f32 to vector<16x256xf32>
    %12 = arith.addf %10, %11 : vector<16x256xf32>
    %c0_8 = arith.constant 0 : index
    %c0_9 = arith.constant 0 : index
    %13 = vector.load %arg2[%c0_8, %c0_9] : memref<32x256xf32, #tpu.memory_space<vmem>>, vector<32x256xf32>
    %cst_10 = arith.constant dense<0.000000e+00> : vector<16x256xf32>
    %14 = tpu.matmul %0, %13, %cst_10 {dimension_numbers = #tpu.dot_dimension_numbers<[1], [0], [0], [1], [0, 0, 1, 1], [], []>} : vector<16x32xf32>, vector<32x256xf32>, vector<16x256xf32> -> vector<16x256xf32>
    %c0_11 = arith.constant 0 : index
    %c0_12 = arith.constant 0 : index
    %15 = vector.load %arg4[%c0_11, %c0_12] : memref<1x256xf32, #tpu.memory_space<vmem>>, vector<1x256xf32>
    %16 = vector.broadcast %15 : vector<1x256xf32> to vector<16x256xf32>
    %17 = arith.addf %14, %16 : vector<16x256xf32>
    %18 = arith.addf %17, %12 : vector<16x256xf32>
    %cst_13 = arith.constant 0.000000e+00 : f32
    %19 = vector.broadcast %cst_13 : f32 to vector<16x256xf32>
    %20 = arith.maximumf %18, %19 : vector<16x256xf32>
    %c0_14 = arith.constant 0 : index
    %c0_15 = arith.constant 0 : index
    %21 = vector.load %arg6[%c0_14, %c0_15] : memref<16x256xf32, #tpu.memory_space<vmem>>, vector<16x256xf32>
    tpu.vector_store %arg6[%c0_14, %c0_15], %20 {strides = array<i32>} : memref<16x256xf32, #tpu.memory_space<vmem>>, vector<16x256xf32>,
    return
  }
  func.func @transform_0(%arg0: i32) -> (i32, i32) {
    %c0_i32 = arith.constant 0 : i32
    %c0_i32_0 = arith.constant 0 : i32
    return %arg0, %c0_i32 : i32, i32
  }
  func.func @transform_1(%arg0: i32) -> (i32, i32) {
    %c0_i32 = arith.constant 0 : i32
    %c0_i32_0 = arith.constant 0 : i32
    %c0_i32_1 = arith.constant 0 : i32
    return %c0_i32, %c0_i32_0 : i32, i32
  }
  func.func @transform_2(%arg0: i32) -> (i32, i32) {
    %c0_i32 = arith.constant 0 : i32
    %c0_i32_0 = arith.constant 0 : i32
    %c0_i32_1 = arith.constant 0 : i32
    return %c0_i32, %c0_i32_0 : i32, i32
  }
  func.func @transform_3(%arg0: i32) -> (i32, i32) {
    %c0_i32 = arith.constant 0 : i32
    %c0_i32_0 = arith.constant 0 : i32
    %c0_i32_1 = arith.constant 0 : i32
    return %c0_i32, %c0_i32_0 : i32, i32
  }
  func.func @transform_4(%arg0: i32) -> (i32, i32) {
    %c0_i32 = arith.constant 0 : i32
    %c0_i32_0 = arith.constant 0 : i32
    %c0_i32_1 = arith.constant 0 : i32
    return %c0_i32, %c0_i32_0 : i32, i32
  }
  func.func @transform_5(%arg0: i32) -> (i32, i32) {
    %c0_i32 = arith.constant 0 : i32
    %c0_i32_0 = arith.constant 0 : i32
    return %arg0, %c0_i32 : i32, i32
  }
}

</mosaic_0001>

<llo_original>
// kernel: timeblock_forward.1
$region0: #{timeblock_forward.1}
  #allocation0 [shape = 'u32[]', space=smem, size = 0x4, offset = 0x4, fixed_abs, tag = 'smem constant byte address 0x4 - core index']
  #allocation1 [shape = 'u32[144,128]{1,0:T(1,128)}', space=vmem, size = 0x12000, scoped, tag = 'internal scratch']
  %s0 = inlined_call_operand.vmem [shape: f32[32,32], index: 0, kind: input, shape index: {}]
  %s1 = inlined_call_operand.vmem [shape: f32[32,256], index: 1, kind: input, shape index: {}]
  %s2 = inlined_call_operand.vmem [shape: f32[32,256], index: 2, kind: input, shape index: {}]
  %s3 = inlined_call_operand.vmem [shape: f32[1,256], index: 3, kind: input, shape index: {}]
  %s4 = inlined_call_operand.vmem [shape: f32[1,256], index: 4, kind: input, shape index: {}]
  %s5 = inlined_call_operand.vmem [shape: f32[32,256], index: 5, kind: output, shape index: {}]
  %s6 = sld [smem:[#allocation0]]
  $region53: #{timeblock_forward.1} parent=0
    _
  %s8 = ssub.s32 1, %s6
  %s9 = scalar_select 0, %s8, %s6
  loop: start=0, step=1, limit=4
  $region2: #{timeblock_forward.1} parent=0 // loop_pre_header
    _
  $region3: #{timeblock_forward.1} parent=0 // loop_header
    %s11 = sphi 0, %s15
    %p12 = scmp.ge.s32.totalorder %s11, 4
    %s21 = sphi 0, %s23
    %s24 = sphi 0, %s21
    %s25 = sphi 0, %s24
    %s41 = sphi 0, %s25
    %s45 = sphi 0, %s45
    %s47 = sphi 0, %s45
    %s48 = sphi 0, %s47
    %s62 = sphi 0, %s48
    %s66 = sphi 0, %s66
    %s68 = sphi 0, %s66
    %s69 = sphi 0, %s68
    %s83 = sphi 0, %s69
    %s87 = sphi 0, %s87
    %s89 = sphi 0, %s87
    %s90 = sphi 0, %s89
    %s104 = sphi 0, %s90
    %s108 = sphi 0, %s108
    %s110 = sphi 0, %s108
    %s111 = sphi 0, %s110
    %s125 = sphi 0, %s111
    %s131 = sphi 0, %s133
    %s134 = sphi 0, %s131
    %s135 = sphi 0, %s134
    %s151 = sphi 0, %s135
  $region4: #{timeblock_forward.1} parent=0 // loop_header_branch
    %14 = sbr.rel (%p12) target = $region8
  $region5: #{timeblock_forward.1} parent=0 // loop_body
    %s16 = ssub.s32 %s11, 1
    %s17 = ssub.s32 %s11, 2
    %s18 = sadd.s32 %s11, 1
    %s19 = ssub.s32 %s11, %s18
    %p20 = scmp.eq.s32.totalorder %s19, 0
    %s22 = sadd.s32 %s21, 1
    %s23 = scalar_select %p20, %s21, %s22
    %p26 = pneg %p20
    %p27 = scmp.eq.s32.totalorder %s11, 1
    %p28 = por %p26, %p27
    %p29 = scmp.ne.s32.totalorder %s21, %s24
    %p30 = scmp.eq.s32.totalorder %s11, 0
    %p31 = por %p29, %p30
    %p32 = scmp.ne.s32.totalorder %s21, %s24
    %p33 = scmp.eq.s32.totalorder %s16, 1
    %p34 = por %p32, %p33
    %p35 = scmp.ne.s32.totalorder %s24, %s25
    %p36 = scmp.eq.s32.totalorder %s16, 0
    %p37 = por %p35, %p36
    %p38 = scmp.ne.s32.totalorder %s24, %s25
    %p39 = scmp.eq.s32.totalorder %s17, 1
    %p40 = por %p38, %p39
    %p42 = scmp.ne.s32.totalorder %s25, %s41
    %p43 = scmp.eq.s32.totalorder %s17, 0
    %p44 = por %p42, %p43
    %s46 = sadd.s32 %s45, 1
    %p49 = scmp.eq.s32.totalorder %s11, 1
    %p50 = scmp.ne.s32.totalorder %s45, %s47
    %p51 = scmp.eq.s32.totalorder %s11, 0
    %p52 = por %p50, %p51
    %p53 = scmp.ne.s32.totalorder %s45, %s47
    %p54 = scmp.eq.s32.totalorder %s16, 1
    %p55 = por %p53, %p54
    %p56 = scmp.ne.s32.totalorder %s47, %s48
    %p57 = scmp.eq.s32.totalorder %s16, 0
    %p58 = por %p56, %p57
    %p59 = scmp.ne.s32.totalorder %s47, %s48
    %p60 = scmp.eq.s32.totalorder %s17, 1
    %p61 = por %p59, %p60
    %p63 = scmp.ne.s32.totalorder %s48, %s62
    %p64 = scmp.eq.s32.totalorder %s17, 0
    %p65 = por %p63, %p64
    %s67 = sadd.s32 %s66, 1
    %p70 = scmp.eq.s32.totalorder %s11, 1
    %p71 = scmp.ne.s32.totalorder %s66, %s68
    %p72 = scmp.eq.s32.totalorder %s11, 0
    %p73 = por %p71, %p72
    %p74 = scmp.ne.s32.totalorder %s66, %s68
    %p75 = scmp.eq.s32.totalorder %s16, 1
    %p76 = por %p74, %p75
    %p77 = scmp.ne.s32.totalorder %s68, %s69
    %p78 = scmp.eq.s32.totalorder %s16, 0
    %p79 = por %p77, %p78
    %p80 = scmp.ne.s32.totalorder %s68, %s69
    %p81 = scmp.eq.s32.totalorder %s17, 1
    %p82 = por %p80, %p81
    %p84 = scmp.ne.s32.totalorder %s69, %s83
    %p85 = scmp.eq.s32.totalorder %s17, 0
    %p86 = por %p84, %p85
    %s88 = sadd.s32 %s87, 1
    %p91 = scmp.eq.s32.totalorder %s11, 1
    %p92 = scmp.ne.s32.totalorder %s87, %s89
    %p93 = scmp.eq.s32.totalorder %s11, 0
    %p94 = por %p92, %p93
    %p95 = scmp.ne.s32.totalorder %s87, %s89
    %p96 = scmp.eq.s32.totalorder %s16, 1
    %p97 = por %p95, %p96
    %p98 = scmp.ne.s32.totalorder %s89, %s90
    %p99 = scmp.eq.s32.totalorder %s16, 0
    %p100 = por %p98, %p99
    %p101 = scmp.ne.s32.totalorder %s89, %s90
    %p102 = scmp.eq.s32.totalorder %s17, 1
    %p103 = por %p101, %p102
    %p105 = scmp.ne.s32.totalorder %s90, %s104
    %p106 = scmp.eq.s32.totalorder %s17, 0
    %p107 = por %p105, %p106
    %s109 = sadd.s32 %s108, 1
    %p112 = scmp.eq.s32.totalorder %s11, 1
    %p113 = scmp.ne.s32.totalorder %s108, %s110
    %p114 = scmp.eq.s32.totalorder %s11, 0
    %p115 = por %p113, %p114
    %p116 = scmp.ne.s32.totalorder %s108, %s110
    %p117 = scmp.eq.s32.totalorder %s16, 1
    %p118 = por %p116, %p117
    %p119 = scmp.ne.s32.totalorder %s110, %s111
    %p120 = scmp.eq.s32.totalorder %s16, 0
    %p121 = por %p119, %p120
    %p122 = scmp.ne.s32.totalorder %s110, %s111
    %p123 = scmp.eq.s32.totalorder %s17, 1
    %p124 = por %p122, %p123
    %p126 = scmp.ne.s32.totalorder %s111, %s125
    %p127 = scmp.eq.s32.totalorder %s17, 0
    %p128 = por %p126, %p127
    %s129 = ssub.s32 %s11, %s18
    %p130 = scmp.eq.s32.totalorder %s129, 0
    %s132 = sadd.s32 %s131, 1
    %s133 = scalar_select %p130, %s131, %s132
    %p136 = pneg %p130
    %p137 = scmp.eq.s32.totalorder %s11, 1
    %p138 = por %p136, %p137
    %p139 = scmp.ne.s32.totalorder %s131, %s134
    %p140 = scmp.eq.s32.totalorder %s11, 0
    %p141 = por %p139, %p140
    %p142 = scmp.ne.s32.totalorder %s131, %s134
    %p143 = scmp.eq.s32.totalorder %s16, 1
    %p144 = por %p142, %p143
    %p145 = scmp.ne.s32.totalorder %s134, %s135
    %p146 = scmp.eq.s32.totalorder %s16, 0
    %p147 = por %p145, %p146
    %p148 = scmp.ne.s32.totalorder %s134, %s135
    %p149 = scmp.eq.s32.totalorder %s17, 1
    %p150 = por %p148, %p149
    %p152 = scmp.ne.s32.totalorder %s135, %s151
    %p153 = scmp.eq.s32.totalorder %s17, 0
    %p154 = por %p152, %p153
    %p155 = scmp.le.s32.totalorder 1, %s11
    %p156 = scmp.lt.s32.totalorder %s11, 3
    %p157 = pnand %p155, %p156
    %p158 = pneg %p157
    // Predicated region
    $region9: #{timeblock_forward.1} parent=5 // pred_check
      _
    $region10: #{timeblock_forward.1} parent=5 // pred_check_branch
      %160 = sbr.rel (%p157) target = $region12
    $region11: #{timeblock_forward.1} parent=5 // pred_region
      %s161 = ssub.s32 %s11, 1
      // Predicated region
      $region13: #{timeblock_forward.1} parent=11 // pred_check
        %p162 = pneg %p58
      $region14: #{timeblock_forward.1} parent=11 // pred_check_branch
        %164 = sbr.rel (%p162) target = $region16
      $region15: #{timeblock_forward.1} parent=11 // pred_region
        _
      $region16: #{timeblock_forward.1} parent=11 // pred_fallthru
        _
      // Predicated region
      $region17: #{timeblock_forward.1} parent=11 // pred_check
        %p165 = pneg %p79
      $region18: #{timeblock_forward.1} parent=11 // pred_check_branch
        %167 = sbr.rel (%p165) target = $region20
      $region19: #{timeblock_forward.1} parent=11 // pred_region
        _
      $region20: #{timeblock_forward.1} parent=11 // pred_fallthru
        _
      // Predicated region
      $region21: #{timeblock_forward.1} parent=11 // pred_check
        %p168 = pneg %p100
      $region22: #{timeblock_forward.1} parent=11 // pred_check_branch
        %170 = sbr.rel (%p168) target = $region24
      $region23: #{timeblock_forward.1} parent=11 // pred_region
        _
      $region24: #{timeblock_forward.1} parent=11 // pred_fallthru
        _
      // Predicated region
      $region25: #{timeblock_forward.1} parent=11 // pred_check
        %p171 = pneg %p121
      $region26: #{timeblock_forward.1} parent=11 // pred_check_branch
        %173 = sbr.rel (%p171) target = $region28
      $region27: #{timeblock_forward.1} parent=11 // pred_region
        _
      $region28: #{timeblock_forward.1} parent=11 // pred_fallthru
        _
    $region12: #{timeblock_forward.1} parent=5 // pred_fallthru
      _
    %p174 = scmp.lt.s32.totalorder %s11, 2
    // Predicated region
    $region29: #{timeblock_forward.1} parent=5 // pred_check
      %p175 = pneg %p174
    $region30: #{timeblock_forward.1} parent=5 // pred_check_branch
      %177 = sbr.rel (%p175) target = $region32
    $region31: #{timeblock_forward.1} parent=5 // pred_region
      // Predicated region
      $region33: #{timeblock_forward.1} parent=31 // pred_check
        %p178 = pneg %p31
      $region34: #{timeblock_forward.1} parent=31 // pred_check_branch
        %180 = sbr.rel (%p178) target = $region36
      $region35: #{timeblock_forward.1} parent=31 // pred_region
        %s181 = smul.u32 2, %s11
        %p182 = scmp.lt.s32.totalorder %s181, 3
        %s183 = scalar_select %p182, %s181, 3
        %s184 = smul.addr %s183, 8
        %s185 = scalar_lea.vmem %s0, %s184
        %s186 = smul.u32 2, %s11
      $region36: #{timeblock_forward.1} parent=31 // pred_fallthru
        _
    $region32: #{timeblock_forward.1} parent=5 // pred_fallthru
      _
    %p187 = scmp.le.s32.totalorder 1, %s11
    %p188 = scmp.lt.s32.totalorder %s11, 3
    %p189 = pnand %p187, %p188
    %p190 = pneg %p189
    // Predicated region
    $region37: #{timeblock_forward.1} parent=5 // pred_check
      _
    $region38: #{timeblock_forward.1} parent=5 // pred_check_branch
      %192 = sbr.rel (%p189) target = $region40
    $region39: #{timeblock_forward.1} parent=5 // pred_region
      %s193 = ssub.s32 %s11, 1
      %s194 = smul.u32 2, %s16
      %p195 = scmp.lt.s32.totalorder %s194, 3
      %s196 = scalar_select %p195, %s194, 3
      %s197 = smul.addr %s196, 8
      %s198 = scalar_lea.vmem %s0, %s197
      %p199 = pneg %p37
      %p200 = pneg %p34
      %p201 = pneg %p58
      %p202 = pneg %p55
      %p203 = pneg %p79
      %p204 = pneg %p76
      %p205 = pneg %p100
      %p206 = pneg %p97
      %p207 = pneg %p121
      %p208 = pneg %p118
      %p209 = pneg %p147
      %p210 = pneg %p144
      %s211 = smul.u32 2, %s16
      %p212 = scmp.lt.s32.totalorder %s211, 3
      %s213 = scalar_select %p212, %s211, 3
      %s214 = smul.addr %s213, 2
      %s215 = smul.addr %s214, 8
      %s216 = scalar_lea.vmem %s5, %s215
      %s217 = smul.u32 2, %s16
      %p218 = scmp.lt.s32.totalorder %s217, 3
      %s219 = scalar_select %p218, %s217, 3
      %s220 = smul.addr %s219, 8
      %s221 = scalar_lea.vmem %s0, %s220
      %s222 = smul.u32 2, %s16
      %s223 = smul.u32 2, %s16
      %p224 = scmp.lt.s32.totalorder %s223, 3
      %s225 = scalar_select %p224, %s223, 3
      %s226 = smul.addr %s225, 2
      %s227 = smul.addr %s226, 8
      %s228 = scalar_lea.vmem %s5, %s227
      %s229 = smul.u32 2, %s16
      %v230 = vld [vmem:[%s221] sm:$0xff]
      %v231 = vld [vmem:[%s221 + $0x8] sm:$0xff]
      %v232 = vld [vmem:[%s2] sm:$0xff]
      %v233 = vld [vmem:[%s2 + $0x8] sm:$0xff]
      %v234 = vld [vmem:[%s2 + $0x10] sm:$0xff]
      %v235 = vld [vmem:[%s2 + $0x18] sm:$0xff]
      %v236 = vld [vmem:[%s2 + $0x20] sm:$0xff]
      %v237 = vld [vmem:[%s2 + $0x28] sm:$0xff]
      %v238 = vld [vmem:[%s2 + $0x30] sm:$0xff]
      %v239 = vld [vmem:[%s2 + $0x38] sm:$0xff]
      %v240 = vld [vmem:[%s4] sm:$0x3]
      %v242 = vlaneseq
      %v243 = vshrl.u32 %v242, 7
      %v244 = vsub.s32 0, %v243
      %v245 = vrot.slane %v240, %v244
      %v246 = vlaneseq
      %v247 = vshrl.u32 %v246, 7
      %v248 = vsub.s32 1, %v247
      %v249 = vrot.slane %v240, %v248
      %vm252 = vcmask 261120
      %v254 = vsel %vm252, %v230, 0
      %v257 = vsel %vm252, %v231, 0
      %259 = vmatprep.subr.mxu0 %v233
      %260 = vmatpush1.msra.mxu0 %v232
      %261 = vmatprep.subr.mxu0 %v235
      %262 = vmatpush1.msra.mxu0 %v234
      %263 = vmatprep.subr.mxu0 %v237
      %264 = vmatpush1.msra.mxu0 %v236
      %265 = vmatprep.subr.mxu0 %v239
      %266 = vmatpush1.msra.mxu0 %v238
      %267 = vmatprep.subr.mxu0 0.0
      %268 = vmatpush1.msra.mxu0 0.0
      %269 = vmatprep.subr.mxu0 0.0
      %270 = vmatpush1.msra.mxu0 0.0
      %271 = vmatprep.subr.mxu0 0.0
      %272 = vmatpush1.msra.mxu0 0.0
      %273 = vmatprep.subr.mxu0 0.0
      %274 = vmatpush1.msra.mxu0 0.0
      %275 = vmatprep.subr.mxu0 0.0
      %276 = vmatpush1.msra.mxu0 0.0
      %277 = vmatprep.subr.mxu0 0.0
      %278 = vmatpush1.msra.mxu0 0.0
      %279 = vmatprep.subr.mxu0 0.0
      %280 = vmatpush1.msra.mxu0 0.0
      %281 = vmatprep.subr.mxu0 0.0
      %282 = vmatpush1.msra.mxu0 0.0
      %283 = vmatprep.subr.mxu0 0.0
      %284 = vmatpush1.msra.mxu0 0.0
      %285 = vmatprep.subr.mxu0 0.0
      %286 = vmatpush1.msra.mxu0 0.0
      %287 = vmatprep.subr.mxu0 0.0
      %288 = vmatpush1.msra.mxu0 0.0
      %289 = vmatprep.subr.mxu0 0.0
      %290 = vmatpush1.msra.mxu0 0.0
      %291 = vmatprep.subr.mxu0 0.0
      %292 = vmatpush1.msra.mxu0 0.0
      %293 = vmatprep.subr.mxu0 0.0
      %294 = vmatpush1.msra.mxu0 0.0
      %295 = vmatprep.subr.mxu0 0.0
      %296 = vmatpush1.msra.mxu0 0.0
      %297 = vmatprep.subr.mxu0 0.0
      %298 = vmatpush1.msra.mxu0 0.0
      %299 = vmatprep.subr.mxu0 0.0
      %300 = vmatpush1.msra.mxu0 0.0
      %301 = vmatprep.subr.mxu0 0.0
      %302 = vmatpush1.msra.mxu0 0.0
      %303 = vmatprep.subr.mxu0 0.0
      %304 = vmatpush1.msra.mxu0 0.0
      %305 = vmatprep.subr.mxu0 0.0
      %306 = vmatpush1.msra.mxu0 0.0
      %307 = vmatprep.subr.mxu0 0.0
      %308 = vmatpush1.msra.mxu0 0.0
      %309 = vmatprep.subr.mxu0 0.0
      %310 = vmatpush1.msra.mxu0 0.0
      %311 = vmatprep.subr.mxu0 0.0
      %312 = vmatpush1.msra.mxu0 0.0
      %313 = vmatprep.subr.mxu0 0.0
      %314 = vmatpush1.msra.mxu0 0.0
      %315 = vmatprep.subr.mxu0 0.0
      %316 = vmatpush1.msra.mxu0 0.0
      %317 = vmatprep.subr.mxu0 0.0
      %318 = vmatpush1.msra.mxu0 0.0
      %319 = vmatprep.subr.mxu0 0.0
      %320 = vmatpush1.msra.mxu0 0.0
      %321 = vmatprep.subr.mxu0 0.0
      %322 = vmatpush1.msra.mxu0 0.0
      %323 = vmatprep.mubr.f32.mxu0 0.0
      %324 = vmatmul.mubr.f32.gmra.mrb[0].mxu0 %v254
      %v325 = vpop.f32.mrb[0].mxu0
      %v326 = vadd.f32 %v245, %v325
      %v327 = vpop.f32.mrb[0].mxu0
      %v328 = vadd.f32 %v249, %v327
      %329 = vmatprep.mubr.f32.mxu0 0.0
      %330 = vmatmul.mubr.f32.gmra.mrb[0].mxu0 %v257
      %v331 = vpop.f32.mrb[0].mxu0
      %v332 = vadd.f32 %v245, %v331
      %v333 = vpop.f32.mrb[0].mxu0
      %v334 = vadd.f32 %v249, %v333
      %335 = vdwg.mxu0
      %v336 = vmul.f32 %v326, 0.5
      %v337 = vmul.f32 %v328, 0.5
      %v338 = vmul.f32 %v332, 0.5
      %v339 = vmul.f32 %v334, 0.5
      %v340 = vtanh.pop %v336
      %v341 = vtanh.pop %v337
      %v342 = vtanh.pop %v338
      %v343 = vtanh.pop %v339
      %v344 = vmul.f32 %v340, 0.5
      %v345 = vmul.f32 %v341, 0.5
      %v346 = vmul.f32 %v342, 0.5
      %v347 = vmul.f32 %v343, 0.5
      %v348 = vadd.f32 %v344, 0.5
      %v349 = vadd.f32 %v345, 0.5
      %v350 = vadd.f32 %v346, 0.5
      %v351 = vadd.f32 %v347, 0.5
      %v352 = vld [vmem:[%s1] sm:$0xff]
      %v353 = vld [vmem:[%s1 + $0x8] sm:$0xff]
      %v354 = vld [vmem:[%s1 + $0x10] sm:$0xff]
      %v355 = vld [vmem:[%s1 + $0x18] sm:$0xff]
      %v356 = vld [vmem:[%s1 + $0x20] sm:$0xff]
      %v357 = vld [vmem:[%s1 + $0x28] sm:$0xff]
      %v358 = vld [vmem:[%s1 + $0x30] sm:$0xff]
      %v359 = vld [vmem:[%s1 + $0x38] sm:$0xff]
      %v360 = vld [vmem:[%s3] sm:$0x3]
      %v362 = vlaneseq
      %v363 = vshrl.u32 %v362, 7
      %v364 = vsub.s32 0, %v363
      %v365 = vrot.slane %v360, %v364
      %v366 = vlaneseq
      %v367 = vshrl.u32 %v366, 7
      %v368 = vsub.s32 1, %v367
      %v369 = vrot.slane %v360, %v368
      %372 = vmatprep.subr.mxu0 %v353
      %373 = vmatpush1.msra.mxu0 %v352
      %374 = vmatprep.subr.mxu0 %v355
      %375 = vmatpush1.msra.mxu0 %v354
      %376 = vmatprep.subr.mxu0 %v357
      %377 = vmatpush1.msra.mxu0 %v356
      %378 = vmatprep.subr.mxu0 %v359
      %379 = vmatpush1.msra.mxu0 %v358
      %380 = vmatprep.subr.mxu0 0.0
      %381 = vmatpush1.msra.mxu0 0.0
      %382 = vmatprep.subr.mxu0 0.0
      %383 = vmatpush1.msra.mxu0 0.0
      %384 = vmatprep.subr.mxu0 0.0
      %385 = vmatpush1.msra.mxu0 0.0
      %386 = vmatprep.subr.mxu0 0.0
      %387 = vmatpush1.msra.mxu0 0.0
      %388 = vmatprep.subr.mxu0 0.0
      %389 = vmatpush1.msra.mxu0 0.0
      %390 = vmatprep.subr.mxu0 0.0
      %391 = vmatpush1.msra.mxu0 0.0
      %392 = vmatprep.subr.mxu0 0.0
      %393 = vmatpush1.msra.mxu0 0.0
      %394 = vmatprep.subr.mxu0 0.0
      %395 = vmatpush1.msra.mxu0 0.0
      %396 = vmatprep.subr.mxu0 0.0
      %397 = vmatpush1.msra.mxu0 0.0
      %398 = vmatprep.subr.mxu0 0.0
      %399 = vmatpush1.msra.mxu0 0.0
      %400 = vmatprep.subr.mxu0 0.0
      %401 = vmatpush1.msra.mxu0 0.0
      %402 = vmatprep.subr.mxu0 0.0
      %403 = vmatpush1.msra.mxu0 0.0
      %404 = vmatprep.subr.mxu0 0.0
      %405 = vmatpush1.msra.mxu0 0.0
      %406 = vmatprep.subr.mxu0 0.0
      %407 = vmatpush1.msra.mxu0 0.0
      %408 = vmatprep.subr.mxu0 0.0
      %409 = vmatpush1.msra.mxu0 0.0
      %410 = vmatprep.subr.mxu0 0.0
      %411 = vmatpush1.msra.mxu0 0.0
      %412 = vmatprep.subr.mxu0 0.0
      %413 = vmatpush1.msra.mxu0 0.0
      %414 = vmatprep.subr.mxu0 0.0
      %415 = vmatpush1.msra.mxu0 0.0
      %416 = vmatprep.subr.mxu0 0.0
      %417 = vmatpush1.msra.mxu0 0.0
      %418 = vmatprep.subr.mxu0 0.0
      %419 = vmatpush1.msra.mxu0 0.0
      %420 = vmatprep.subr.mxu0 0.0
      %421 = vmatpush1.msra.mxu0 0.0
      %422 = vmatprep.subr.mxu0 0.0
      %423 = vmatpush1.msra.mxu0 0.0
      %424 = vmatprep.subr.mxu0 0.0
      %425 = vmatpush1.msra.mxu0 0.0
      %426 = vmatprep.subr.mxu0 0.0
      %427 = vmatpush1.msra.mxu0 0.0
      %428 = vmatprep.subr.mxu0 0.0
      %429 = vmatpush1.msra.mxu0 0.0
      %430 = vmatprep.subr.mxu0 0.0
      %431 = vmatpush1.msra.mxu0 0.0
      %432 = vmatprep.subr.mxu0 0.0
      %433 = vmatpush1.msra.mxu0 0.0
      %434 = vmatprep.subr.mxu0 0.0
      %435 = vmatpush1.msra.mxu0 0.0
      %436 = vmatprep.mubr.f32.mxu0 0.0
      %437 = vmatmul.mubr.f32.gmra.mrb[0].mxu0 %v254
      %v438 = vpop.f32.mrb[0].mxu0
      %v439 = vadd.f32 %v365, %v438
      %v440 = vpop.f32.mrb[0].mxu0
      %v441 = vadd.f32 %v369, %v440
      %442 = vmatprep.mubr.f32.mxu0 0.0
      %443 = vmatmul.mubr.f32.gmra.mrb[0].mxu0 %v257
      %v444 = vpop.f32.mrb[0].mxu0
      %v445 = vadd.f32 %v365, %v444
      %v446 = vpop.f32.mrb[0].mxu0
      %v447 = vadd.f32 %v369, %v446
      %448 = vdwg.mxu0
      %v449 = vadd.f32 %v439, %v348
      %v450 = vadd.f32 %v441, %v349
      %v451 = vadd.f32 %v445, %v350
      %v452 = vadd.f32 %v447, %v351
      %v453 = vmax.f32 %v449, 0.0
      %v454 = vmax.f32 %v450, 0.0
      %v455 = vmax.f32 %v451, 0.0
      %v456 = vmax.f32 %v452, 0.0
      %457 = vst [vmem:[%s228] sm:$0xff] %v453
      %458 = vst [vmem:[%s228 + $0x8] sm:$0xff] %v454
      %459 = vst [vmem:[%s228 + $0x10] sm:$0xff] %v455
      %460 = vst [vmem:[%s228 + $0x18] sm:$0xff] %v456
      %s461 = smul.u32 2, %s16
      %p462 = scmp.lt.s32.totalorder %s461, 3
      %s463 = scalar_select %p462, %s461, 3
      %s464 = smul.addr %s463, 2
      %s465 = smul.addr %s464, 8
      %s466 = scalar_lea.vmem %s5, %s465
      // Predicated region
      $region41: #{timeblock_forward.1} parent=39 // pred_check
        %p467 = pneg %p144
      $region42: #{timeblock_forward.1} parent=39 // pred_check_branch
        %469 = sbr.rel (%p467) target = $region44
      $region43: #{timeblock_forward.1} parent=39 // pred_region
        %s470 = smul.u32 2, %s16
      $region44: #{timeblock_forward.1} parent=39 // pred_fallthru
        _
    $region40: #{timeblock_forward.1} parent=5 // pred_fallthru
      _
    %p471 = scmp.le.s32.totalorder 2, %s11
    // Predicated region
    $region45: #{timeblock_forward.1} parent=5 // pred_check
      %p472 = pneg %p471
    $region46: #{timeblock_forward.1} parent=5 // pred_check_branch
      %474 = sbr.rel (%p472) target = $region48
    $region47: #{timeblock_forward.1} parent=5 // pred_region
      %s475 = ssub.s32 %s11, 2
      // Predicated region
      $region49: #{timeblock_forward.1} parent=47 // pred_check
        %p476 = pneg %p150
      $region50: #{timeblock_forward.1} parent=47 // pred_check_branch
        %478 = sbr.rel (%p476) target = $region52
      $region51: #{timeblock_forward.1} parent=47 // pred_region
        %s479 = smul.u32 2, %s17
        %p480 = scmp.lt.s32.totalorder %s479, 3
        %s481 = scalar_select %p480, %s479, 3
        %s482 = smul.addr %s481, 2
        %s483 = smul.addr %s482, 8
        %s484 = scalar_lea.vmem %s5, %s483
      $region52: #{timeblock_forward.1} parent=47 // pred_fallthru
        _
    $region48: #{timeblock_forward.1} parent=5 // pred_fallthru
      _
  $region6: #{timeblock_forward.1} parent=0 // loop_footer
    %s15 = sadd.s32 1, %s11
  $region7: #{timeblock_forward.1} parent=0 // loop_footer_branch
    %10 = sbr.rel target = $region3
  $region8: #{timeblock_forward.1} parent=0 // loop_exit
    _

</llo_original>
